<compile_context>
chip_gen: v6e
topology: v6e:2x2x1
jax: 0.10.0
libtpu: 0.0.40
codegen_flags: <defaults>
</compile_context>

<pallas_src>
import jax
import jax.numpy as jnp
from jax.experimental import pallas as pl
from jax.experimental.pallas import tpu as pltpu


def mlp_logit_kernel(co_ref, w1m_ref, b1_ref, w2bd_ref, b2_ref, out_ref):
    # co_ref  : (TB, N*N)       batch tile of flattened co-occurrence matrices
    # w1m_ref : (N*N, L*H)      mask-folded first Linear (resident)
    # b1_ref  : (1, L*H)        first bias, tiled over L
    # w2bd_ref: (L*H, L*N)      block-diagonal second Linear (resident)
    # b2_ref  : (1, L*N)        second bias, tiled over L
    # out_ref : (TB, L*N)
    h = jnp.dot(co_ref[...], w1m_ref[...], preferred_element_type=jnp.float32)
    h = jnp.maximum(h + b1_ref[...], 0.0)
    logits = jnp.dot(h.astype(w2bd_ref.dtype), w2bd_ref[...],
                     preferred_element_type=jnp.float32) + b2_ref[...]
    out_ref[...] = logits.astype(out_ref.dtype)


def fold_mlp_weights(layer_idc, w1, b1, w2, b2, num_nodes):
    """Fold layer mask + layer gather into the MLP weights (O(weights) work).

    w1: (H, N*N), b1: (H,), w2: (N, H), b2: (N,)   [PyTorch nn.Linear layout]
    Returns:
      w1m : (N*N, L*H)   w1m[k, l*H+h] = [k//N < layer_idc[l]] * w1[h, k]
      b1t : (1, L*H)     b1 tiled L times
      w2bd: (L*H, L*N)   block-diagonal replication of w2.T
      b2t : (1, L*N)     b2 tiled L times
    """
    N = num_nodes
    H, NN = w1.shape
    assert NN == N * N, (w1.shape, num_nodes)
    n_out = w2.shape[0]
    layer_idc = jnp.asarray(layer_idc, dtype=jnp.int32)
    L = layer_idc.shape[0]
    dtype = w1.dtype

    # sel[l, r] = 1 iff row r of the co matrix is kept for layer_idc[l].
    sel = (jnp.arange(N, dtype=jnp.int32)[None, :]
           < layer_idc[:, None]).astype(dtype)                     # (L, N)
    selm = jnp.repeat(sel, N, axis=1)                              # (L, N*N)

    w1m = selm[:, :, None] * jnp.asarray(w1).T[None, :, :]         # (L, NN, H)
    w1m = jnp.transpose(w1m, (1, 0, 2)).reshape(NN, L * H)         # (NN, L*H)
    b1t = jnp.tile(jnp.asarray(b1), (L,)).reshape(1, L * H)

    w2bd = jnp.einsum('ij,nh->ihjn', jnp.eye(L, dtype=dtype),
                      jnp.asarray(w2)).reshape(L * H, L * n_out)   # (L*H, L*N)
    b2t = jnp.tile(jnp.asarray(b2), (L,)).reshape(1, L * n_out)
    return w1m, b1t, w2bd, b2t


def mlp_logit_map(co_mats, layer_idc, w1, b1, w2, b2, *, block_b=None):
    """Pallas-backed forward of MLPLogitMap.

    co_mats:   (B, N, N) float32
    layer_idc: (L,) int
    w1/b1/w2/b2: raw PyTorch nn.Linear parameters (out, in) / (out,)
    returns:   (B, L, N) float32
    """
    B, N, N2 = co_mats.shape
    assert N == N2, co_mats.shape
    H, NN = w1.shape
    assert NN == N * N, (w1.shape, N)
    n_out = w2.shape[0]
    layer_idc = jnp.asarray(layer_idc, dtype=jnp.int32)
    L = layer_idc.shape[0]
    dtype = co_mats.dtype

    # One-time (per layer_idc) weight folding; O(L*N^2*H), independent of B.
    w1m, b1t, w2bd, b2t = fold_mlp_weights(layer_idc, w1, b1, w2, b2, N)
    w1m = w1m.astype(dtype)
    b1t = b1t.astype(dtype)
    w2bd = w2bd.astype(dtype)
    b2t = b2t.astype(dtype)

    co_flat = co_mats.reshape(B, NN)

    # Batch tiling: biggest reasonable tile (per-step overhead ~0.35us), and a
    # multiple of 8 to satisfy the (8, 128) sublane constraint.
    if block_b is None:
        block_b = min(max(B, 8), 1024)
    block_b = ((int(block_b) + 7) // 8) * 8
    grid_b = pl.cdiv(B, block_b)
    B_pad = grid_b * block_b
    if B_pad != B:
        co_flat = jnp.pad(co_flat, ((0, B_pad - B), (0, 0)))

    grid_spec = pltpu.PrefetchScalarGridSpec(
        num_scalar_prefetch=0,
        grid=(grid_b,),
        in_specs=[
            pl.BlockSpec((block_b, NN), lambda i: (i, 0)),          # co tile
            pl.BlockSpec((NN, L * H), lambda i: (0, 0)),            # w1m (resident)
            pl.BlockSpec((1, L * H), lambda i: (0, 0)),             # b1
            pl.BlockSpec((L * H, L * n_out), lambda i: (0, 0)),     # w2bd (resident)
            pl.BlockSpec((1, L * n_out), lambda i: (0, 0)),         # b2
        ],
        out_specs=pl.BlockSpec((block_b, L * n_out), lambda i: (i, 0)),
    )

    out_flat = pl.pallas_call(
        mlp_logit_kernel,
        out_shape=jax.ShapeDtypeStruct((B_pad, L * n_out), dtype),
        grid_spec=grid_spec,
        compiler_params=pltpu.CompilerParams(
            dimension_semantics=("parallel",),   # shard batch grid over 2 TCs (v7x)
        ),
    )(co_flat, w1m, b1t, w2bd, b2t)

    return out_flat[:B].reshape(B, L, n_out)


def mlp_logit_map_ref(co_mats, layer_idc, w1, b1, w2, b2):
    """Pure-JAX reference matching the PyTorch forward (original formulation)."""
    B, N, _ = co_mats.shape
    layer_idc = jnp.asarray(layer_idc)
    L = layer_idc.shape[0]
    i_idx = jnp.arange(N)[:, None, None]
    r_idx = jnp.arange(N)[None, :, None]
    layer_mask = jnp.broadcast_to((r_idx < i_idx).astype(co_mats.dtype), (N, N, N))
    z = co_mats[:, None, :, :] * layer_mask[layer_idc][None, :, :, :]
    z = z.reshape(B, L, N * N)
    h = jnp.maximum(z @ w1.T + b1, 0.0)
    return h @ w2.T + b2


if __name__ == "__main__":
    # Small shapes consistent with the module: num_nodes=8, hidden=32.
    # B=20 with block_b=8 exercises padding AND a real multi-step pipeline.
    B, N, H = 20, 8, 32
    NN = N * N

    key = jax.random.PRNGKey(0)
    k_co, k_w1, k_b1, k_w2, k_b2 = jax.random.split(key, 5)

    co_mats = jax.random.normal(k_co, (B, N, N), dtype=jnp.float32)
    layer_idc = jnp.arange(N, dtype=jnp.int32)          # L = N = 8

    # Deterministic synthetic parameters (PyTorch nn.Linear layout: (out, in)).
    w1 = 0.1 * jax.random.normal(k_w1, (H, NN), dtype=jnp.float32)
    b1 = 0.1 * jax.random.normal(k_b1, (H,), dtype=jnp.float32)
    w2 = 0.1 * jax.random.normal(k_w2, (N, H), dtype=jnp.float32)
    b2 = 0.1 * jax.random.normal(k_b2, (N,), dtype=jnp.float32)

    out = mlp_logit_map(co_mats, layer_idc, w1, b1, w2, b2, block_b=8)
    out = jax.block_until_ready(out)

    ref = mlp_logit_map_ref(co_mats, layer_idc, w1, b1, w2, b2)
    L = layer_idc.shape[0]
    assert out.shape == (B, L, N), out.shape
    max_err = float(jnp.max(jnp.abs(out - ref)))
    assert jnp.allclose(out, ref, atol=1e-4, rtol=1e-4), f"mismatch, max_err={max_err}"

    print("KERNEL_OK")
</pallas_src>

<mosaic_0001>
module attributes {stable_mosaic.version = 11 : i64} {
  func.func @mlp_logit_kernel(%arg0: i32, %arg1: memref<8x64xf32, #tpu.memory_space<vmem>>, %arg2: memref<64x256xf32, #tpu.memory_space<vmem>>, %arg3: memref<1x256xf32, #tpu.memory_space<vmem>>, %arg4: memref<256x64xf32, #tpu.memory_space<vmem>>, %arg5: memref<1x64xf32, #tpu.memory_space<vmem>>, %arg6: memref<8x64xf32, #tpu.memory_space<vmem>>) attributes {dimension_semantics = [#tpu.dimension_semantics<parallel>], iteration_bounds = array<i64: 3>, scalar_prefetch = 0 : i64, scratch_operands = 0 : i64, tpu.core_type = #tpu.core_type<tc>, window_params = [{transform_indices = @transform_0, window_bounds = array<i64: 8, 64>}, {pipeline_mode = #tpu.pipeline_mode<synchronous>, transform_indices = @transform_1, window_bounds = array<i64: 64, 256>}, {pipeline_mode = #tpu.pipeline_mode<synchronous>, transform_indices = @transform_2, window_bounds = array<i64: 1, 256>}, {pipeline_mode = #tpu.pipeline_mode<synchronous>, transform_indices = @transform_3, window_bounds = array<i64: 256, 64>}, {pipeline_mode = #tpu.pipeline_mode<synchronous>, transform_indices = @transform_4, window_bounds = array<i64: 1, 64>}, {transform_indices = @transform_5, window_bounds = array<i64: 8, 64>}]} {
    %c0 = arith.constant 0 : index
    %c0_0 = arith.constant 0 : index
    %0 = vector.load %arg1[%c0, %c0_0] : memref<8x64xf32, #tpu.memory_space<vmem>>, vector<8x64xf32>
    %c0_1 = arith.constant 0 : index
    %c0_2 = arith.constant 0 : index
    %1 = vector.load %arg2[%c0_1, %c0_2] : memref<64x256xf32, #tpu.memory_space<vmem>>, vector<64x256xf32>
    %cst = arith.constant dense<0.000000e+00> : vector<8x256xf32>
    %2 = tpu.matmul %0, %1, %cst {dimension_numbers = #tpu.dot_dimension_numbers<[1], [0], [0], [1], [0, 0, 1, 1], [], []>} : vector<8x64xf32>, vector<64x256xf32>, vector<8x256xf32> -> vector<8x256xf32>
    %c0_3 = arith.constant 0 : index
    %c0_4 = arith.constant 0 : index
    %3 = vector.load %arg3[%c0_3, %c0_4] : memref<1x256xf32, #tpu.memory_space<vmem>>, vector<1x256xf32>
    %4 = vector.broadcast %3 : vector<1x256xf32> to vector<8x256xf32>
    %5 = arith.addf %2, %4 : vector<8x256xf32>
    %cst_5 = arith.constant 0.000000e+00 : f32
    %6 = vector.broadcast %cst_5 : f32 to vector<8x256xf32>
    %7 = arith.maximumf %5, %6 : vector<8x256xf32>
    %c0_6 = arith.constant 0 : index
    %c0_7 = arith.constant 0 : index
    %8 = vector.load %arg4[%c0_6, %c0_7] : memref<256x64xf32, #tpu.memory_space<vmem>>, vector<256x64xf32>
    %cst_8 = arith.constant dense<0.000000e+00> : vector<8x64xf32>
    %9 = tpu.matmul %7, %8, %cst_8 {dimension_numbers = #tpu.dot_dimension_numbers<[1], [0], [0], [1], [0, 0, 1, 1], [], []>} : vector<8x256xf32>, vector<256x64xf32>, vector<8x64xf32> -> vector<8x64xf32>
    %c0_9 = arith.constant 0 : index
    %c0_10 = arith.constant 0 : index
    %10 = vector.load %arg5[%c0_9, %c0_10] : memref<1x64xf32, #tpu.memory_space<vmem>>, vector<1x64xf32>
    %11 = vector.broadcast %10 : vector<1x64xf32> to vector<8x64xf32>
    %12 = arith.addf %9, %11 : vector<8x64xf32>
    %c0_11 = arith.constant 0 : index
    %c0_12 = arith.constant 0 : index
    %13 = vector.load %arg6[%c0_11, %c0_12] : memref<8x64xf32, #tpu.memory_space<vmem>>, vector<8x64xf32>
    tpu.vector_store %arg6[%c0_11, %c0_12], %12 {strides = array<i32>} : memref<8x64xf32, #tpu.memory_space<vmem>>, vector<8x64xf32>,
    return
  }
  func.func @transform_0(%arg0: i32) -> (i32, i32) {
    %c0_i32 = arith.constant 0 : i32
    %c0_i32_0 = arith.constant 0 : i32
    return %arg0, %c0_i32 : i32, i32
  }
  func.func @transform_1(%arg0: i32) -> (i32, i32) {
    %c0_i32 = arith.constant 0 : i32
    %c0_i32_0 = arith.constant 0 : i32
    %c0_i32_1 = arith.constant 0 : i32
    return %c0_i32, %c0_i32_0 : i32, i32
  }
  func.func @transform_2(%arg0: i32) -> (i32, i32) {
    %c0_i32 = arith.constant 0 : i32
    %c0_i32_0 = arith.constant 0 : i32
    %c0_i32_1 = arith.constant 0 : i32
    return %c0_i32, %c0_i32_0 : i32, i32
  }
  func.func @transform_3(%arg0: i32) -> (i32, i32) {
    %c0_i32 = arith.constant 0 : i32
    %c0_i32_0 = arith.constant 0 : i32
    %c0_i32_1 = arith.constant 0 : i32
    return %c0_i32, %c0_i32_0 : i32, i32
  }
  func.func @transform_4(%arg0: i32) -> (i32, i32) {
    %c0_i32 = arith.constant 0 : i32
    %c0_i32_0 = arith.constant 0 : i32
    %c0_i32_1 = arith.constant 0 : i32
    return %c0_i32, %c0_i32_0 : i32, i32
  }
  func.func @transform_5(%arg0: i32) -> (i32, i32) {
    %c0_i32 = arith.constant 0 : i32
    %c0_i32_0 = arith.constant 0 : i32
    return %arg0, %c0_i32 : i32, i32
  }
}

</mosaic_0001>

<llo_original>
// kernel: tpu_custom_call.1
$region0: #{tpu_custom_call.1}
  #allocation0 [shape = 'u32[]', space=smem, size = 0x4, offset = 0x4, fixed_abs, tag = 'smem constant byte address 0x4 - core index']
  #allocation1 [shape = 'u32[144,128]{1,0:T(1,128)}', space=vmem, size = 0x12000, scoped, tag = 'internal scratch']
  %s0 = inlined_call_operand.vmem [shape: f32[24,64], index: 0, kind: input, shape index: {}]
  %s1 = inlined_call_operand.vmem [shape: f32[64,256], index: 1, kind: input, shape index: {}]
  %s2 = inlined_call_operand.vmem [shape: f32[1,256], index: 2, kind: input, shape index: {}]
  %s3 = inlined_call_operand.vmem [shape: f32[256,64], index: 3, kind: input, shape index: {}]
  %s4 = inlined_call_operand.vmem [shape: f32[1,64], index: 4, kind: input, shape index: {}]
  %s5 = inlined_call_operand.hbm [shape: f32[24,64], index: 5, kind: output, shape index: {}]
  %s6 = sld [smem:[#allocation0]]
  $region53: #{tpu_custom_call.1} parent=0
    _
  %s8 = ssub.s32 1, %s6
  %s9 = scalar_select 0, %s8, %s6
  $region1: #{tpu_custom_call.1} parent=0
    #allocation2 [shape = 'u8[8192]{0}', space=vmem, size = 0x2000, scoped, tag = 'output window, operand 0']
    #allocation3 [shape = 's32[2]{0}', space=sflag, size = 0x8, scoped, tag = 'scoped memory for tpu_custom_call.1']
    %10 = vsyncpa [#allocation3], 0
    %s11 = scalar_lea.sflag [#allocation3], 1
    %12 = vsyncpa %s11, 0
    loop: start=0, step=1, limit=5
    $region2: #{tpu_custom_call.1} parent=1 // loop_pre_header
      _
    $region3: #{tpu_custom_call.1} parent=1 // loop_header
      %s14 = sphi 0, %s18
      %p15 = scmp.ge.s32.totalorder %s14, 5
      %s24 = sphi 0, %s26
      %s27 = sphi 0, %s24
      %s28 = sphi 0, %s27
      %s44 = sphi 0, %s28
      %s48 = sphi 0, %s48
      %s50 = sphi 0, %s48
      %s51 = sphi 0, %s50
      %s65 = sphi 0, %s51
      %s69 = sphi 0, %s69
      %s71 = sphi 0, %s69
      %s72 = sphi 0, %s71
      %s86 = sphi 0, %s72
      %s90 = sphi 0, %s90
      %s92 = sphi 0, %s90
      %s93 = sphi 0, %s92
      %s107 = sphi 0, %s93
      %s111 = sphi 0, %s111
      %s113 = sphi 0, %s111
      %s114 = sphi 0, %s113
      %s128 = sphi 0, %s114
      %s134 = sphi 0, %s136
      %s137 = sphi 0, %s134
      %s138 = sphi 0, %s137
      %s154 = sphi 0, %s138
    $region4: #{tpu_custom_call.1} parent=1 // loop_header_branch
      %17 = sbr.rel (%p15) target = $region8
    $region5: #{tpu_custom_call.1} parent=1 // loop_body
      %s19 = ssub.s32 %s14, 1
      %s20 = ssub.s32 %s14, 2
      %s21 = sadd.s32 %s14, 1
      %s22 = ssub.s32 %s14, %s21
      %p23 = scmp.eq.s32.totalorder %s22, 0
      %s25 = sadd.s32 %s24, 1
      %s26 = scalar_select %p23, %s24, %s25
      %p29 = pneg %p23
      %p30 = scmp.eq.s32.totalorder %s14, 2
      %p31 = por %p29, %p30
      %p32 = scmp.ne.s32.totalorder %s24, %s27
      %p33 = scmp.eq.s32.totalorder %s14, 0
      %p34 = por %p32, %p33
      %p35 = scmp.ne.s32.totalorder %s24, %s27
      %p36 = scmp.eq.s32.totalorder %s19, 2
      %p37 = por %p35, %p36
      %p38 = scmp.ne.s32.totalorder %s27, %s28
      %p39 = scmp.eq.s32.totalorder %s19, 0
      %p40 = por %p38, %p39
      %p41 = scmp.ne.s32.totalorder %s27, %s28
      %p42 = scmp.eq.s32.totalorder %s20, 2
      %p43 = por %p41, %p42
      %p45 = scmp.ne.s32.totalorder %s28, %s44
      %p46 = scmp.eq.s32.totalorder %s20, 0
      %p47 = por %p45, %p46
      %s49 = sadd.s32 %s48, 1
      %p52 = scmp.eq.s32.totalorder %s14, 2
      %p53 = scmp.ne.s32.totalorder %s48, %s50
      %p54 = scmp.eq.s32.totalorder %s14, 0
      %p55 = por %p53, %p54
      %p56 = scmp.ne.s32.totalorder %s48, %s50
      %p57 = scmp.eq.s32.totalorder %s19, 2
      %p58 = por %p56, %p57
      %p59 = scmp.ne.s32.totalorder %s50, %s51
      %p60 = scmp.eq.s32.totalorder %s19, 0
      %p61 = por %p59, %p60
      %p62 = scmp.ne.s32.totalorder %s50, %s51
      %p63 = scmp.eq.s32.totalorder %s20, 2
      %p64 = por %p62, %p63
      %p66 = scmp.ne.s32.totalorder %s51, %s65
      %p67 = scmp.eq.s32.totalorder %s20, 0
      %p68 = por %p66, %p67
      %s70 = sadd.s32 %s69, 1
      %p73 = scmp.eq.s32.totalorder %s14, 2
      %p74 = scmp.ne.s32.totalorder %s69, %s71
      %p75 = scmp.eq.s32.totalorder %s14, 0
      %p76 = por %p74, %p75
      %p77 = scmp.ne.s32.totalorder %s69, %s71
      %p78 = scmp.eq.s32.totalorder %s19, 2
      %p79 = por %p77, %p78
      %p80 = scmp.ne.s32.totalorder %s71, %s72
      %p81 = scmp.eq.s32.totalorder %s19, 0
      %p82 = por %p80, %p81
      %p83 = scmp.ne.s32.totalorder %s71, %s72
      %p84 = scmp.eq.s32.totalorder %s20, 2
      %p85 = por %p83, %p84
      %p87 = scmp.ne.s32.totalorder %s72, %s86
      %p88 = scmp.eq.s32.totalorder %s20, 0
      %p89 = por %p87, %p88
      %s91 = sadd.s32 %s90, 1
      %p94 = scmp.eq.s32.totalorder %s14, 2
      %p95 = scmp.ne.s32.totalorder %s90, %s92
      %p96 = scmp.eq.s32.totalorder %s14, 0
      %p97 = por %p95, %p96
      %p98 = scmp.ne.s32.totalorder %s90, %s92
      %p99 = scmp.eq.s32.totalorder %s19, 2
      %p100 = por %p98, %p99
      %p101 = scmp.ne.s32.totalorder %s92, %s93
      %p102 = scmp.eq.s32.totalorder %s19, 0
      %p103 = por %p101, %p102
      %p104 = scmp.ne.s32.totalorder %s92, %s93
      %p105 = scmp.eq.s32.totalorder %s20, 2
      %p106 = por %p104, %p105
      %p108 = scmp.ne.s32.totalorder %s93, %s107
      %p109 = scmp.eq.s32.totalorder %s20, 0
      %p110 = por %p108, %p109
      %s112 = sadd.s32 %s111, 1
      %p115 = scmp.eq.s32.totalorder %s14, 2
      %p116 = scmp.ne.s32.totalorder %s111, %s113
      %p117 = scmp.eq.s32.totalorder %s14, 0
      %p118 = por %p116, %p117
      %p119 = scmp.ne.s32.totalorder %s111, %s113
      %p120 = scmp.eq.s32.totalorder %s19, 2
      %p121 = por %p119, %p120
      %p122 = scmp.ne.s32.totalorder %s113, %s114
      %p123 = scmp.eq.s32.totalorder %s19, 0
      %p124 = por %p122, %p123
      %p125 = scmp.ne.s32.totalorder %s113, %s114
      %p126 = scmp.eq.s32.totalorder %s20, 2
      %p127 = por %p125, %p126
      %p129 = scmp.ne.s32.totalorder %s114, %s128
      %p130 = scmp.eq.s32.totalorder %s20, 0
      %p131 = por %p129, %p130
      %s132 = ssub.s32 %s14, %s21
      %p133 = scmp.eq.s32.totalorder %s132, 0
      %s135 = sadd.s32 %s134, 1
      %s136 = scalar_select %p133, %s134, %s135
      %p139 = pneg %p133
      %p140 = scmp.eq.s32.totalorder %s14, 2
      %p141 = por %p139, %p140
      %p142 = scmp.ne.s32.totalorder %s134, %s137
      %p143 = scmp.eq.s32.totalorder %s14, 0
      %p144 = por %p142, %p143
      %p145 = scmp.ne.s32.totalorder %s134, %s137
      %p146 = scmp.eq.s32.totalorder %s19, 2
      %p147 = por %p145, %p146
      %p148 = scmp.ne.s32.totalorder %s137, %s138
      %p149 = scmp.eq.s32.totalorder %s19, 0
      %p150 = por %p148, %p149
      %p151 = scmp.ne.s32.totalorder %s137, %s138
      %p152 = scmp.eq.s32.totalorder %s20, 2
      %p153 = por %p151, %p152
      %p155 = scmp.ne.s32.totalorder %s138, %s154
      %p156 = scmp.eq.s32.totalorder %s20, 0
      %p157 = por %p155, %p156
      %p158 = scmp.le.s32.totalorder 1, %s14
      %p159 = scmp.lt.s32.totalorder %s14, 4
      %p160 = pnand %p158, %p159
      %p161 = pneg %p160
      // Predicated region
      $region9: #{tpu_custom_call.1} parent=5 // pred_check
        _
      $region10: #{tpu_custom_call.1} parent=5 // pred_check_branch
        %163 = sbr.rel (%p160) target = $region12
      $region11: #{tpu_custom_call.1} parent=5 // pred_region
        %s164 = ssub.s32 %s14, 1
        // Predicated region
        $region13: #{tpu_custom_call.1} parent=11 // pred_check
          %p165 = pneg %p61
        $region14: #{tpu_custom_call.1} parent=11 // pred_check_branch
          %167 = sbr.rel (%p165) target = $region16
        $region15: #{tpu_custom_call.1} parent=11 // pred_region
          _
        $region16: #{tpu_custom_call.1} parent=11 // pred_fallthru
          _
        // Predicated region
        $region17: #{tpu_custom_call.1} parent=11 // pred_check
          %p168 = pneg %p82
        $region18: #{tpu_custom_call.1} parent=11 // pred_check_branch
          %170 = sbr.rel (%p168) target = $region20
        $region19: #{tpu_custom_call.1} parent=11 // pred_region
          _
        $region20: #{tpu_custom_call.1} parent=11 // pred_fallthru
          _
        // Predicated region
        $region21: #{tpu_custom_call.1} parent=11 // pred_check
          %p171 = pneg %p103
        $region22: #{tpu_custom_call.1} parent=11 // pred_check_branch
          %173 = sbr.rel (%p171) target = $region24
        $region23: #{tpu_custom_call.1} parent=11 // pred_region
          _
        $region24: #{tpu_custom_call.1} parent=11 // pred_fallthru
          _
        // Predicated region
        $region25: #{tpu_custom_call.1} parent=11 // pred_check
          %p174 = pneg %p124
        $region26: #{tpu_custom_call.1} parent=11 // pred_check_branch
          %176 = sbr.rel (%p174) target = $region28
        $region27: #{tpu_custom_call.1} parent=11 // pred_region
          _
        $region28: #{tpu_custom_call.1} parent=11 // pred_fallthru
          _
      $region12: #{tpu_custom_call.1} parent=5 // pred_fallthru
        _
      %p177 = scmp.lt.s32.totalorder %s14, 3
      // Predicated region
      $region29: #{tpu_custom_call.1} parent=5 // pred_check
        %p178 = pneg %p177
      $region30: #{tpu_custom_call.1} parent=5 // pred_check_branch
        %180 = sbr.rel (%p178) target = $region32
      $region31: #{tpu_custom_call.1} parent=5 // pred_region
        // Predicated region
        $region33: #{tpu_custom_call.1} parent=31 // pred_check
          %p181 = pneg %p34
        $region34: #{tpu_custom_call.1} parent=31 // pred_check_branch
          %183 = sbr.rel (%p181) target = $region36
        $region35: #{tpu_custom_call.1} parent=31 // pred_region
          %p184 = scmp.lt.s32.totalorder %s14, 2
          %s185 = scalar_select %p184, %s14, 2
          %s186 = smul.addr %s185, 8
          %s187 = scalar_lea.vmem %s0, %s186
        $region36: #{tpu_custom_call.1} parent=31 // pred_fallthru
          _
      $region32: #{tpu_custom_call.1} parent=5 // pred_fallthru
        _
      %p188 = scmp.le.s32.totalorder 1, %s14
      %p189 = scmp.lt.s32.totalorder %s14, 4
      %p190 = pnand %p188, %p189
      %p191 = pneg %p190
      // Predicated region
      $region37: #{tpu_custom_call.1} parent=5 // pred_check
        _
      $region38: #{tpu_custom_call.1} parent=5 // pred_check_branch
        %193 = sbr.rel (%p190) target = $region40
      $region39: #{tpu_custom_call.1} parent=5 // pred_region
        %s194 = ssub.s32 %s14, 1
        %p195 = scmp.lt.s32.totalorder %s19, 2
        %s196 = scalar_select %p195, %s19, 2
        %s197 = smul.addr %s196, 8
        %s198 = scalar_lea.vmem %s0, %s197
        %p199 = pneg %p40
        %p200 = pneg %p37
        %p201 = pneg %p61
        %p202 = pneg %p58
        %p203 = pneg %p82
        %p204 = pneg %p79
        %p205 = pneg %p103
        %p206 = pneg %p100
        %p207 = pneg %p124
        %p208 = pneg %p121
        %p209 = pneg %p150
        %p210 = pneg %p147
        %s211 = sand.u32 %s137, 1
        %s212 = scalar_lea.sflag [#allocation3], %s211
        %s213 = sand.u32 %s137, 1
        %s214 = smul.addr %s213, 8
        %s215 = scalar_lea.vmem [#allocation2], %s214
        %p216 = scmp.lt.s32.totalorder %s19, 2
        %s217 = scalar_select %p216, %s19, 2
        %s218 = smul.addr %s217, 8
        %s219 = scalar_lea.vmem %s0, %s218
        %v220 = vld [vmem:[%s219] sm:$0xff]
        %v221 = vld [vmem:[%s1] sm:$0xff]
        %v222 = vld [vmem:[%s1 + $0x8] sm:$0xff]
        %v223 = vld [vmem:[%s1 + $0x10] sm:$0xff]
        %v224 = vld [vmem:[%s1 + $0x18] sm:$0xff]
        %v225 = vld [vmem:[%s1 + $0x20] sm:$0xff]
        %v226 = vld [vmem:[%s1 + $0x28] sm:$0xff]
        %v227 = vld [vmem:[%s1 + $0x30] sm:$0xff]
        %v228 = vld [vmem:[%s1 + $0x38] sm:$0xff]
        %v229 = vld [vmem:[%s1 + $0x40] sm:$0xff]
        %v230 = vld [vmem:[%s1 + $0x48] sm:$0xff]
        %v231 = vld [vmem:[%s1 + $0x50] sm:$0xff]
        %v232 = vld [vmem:[%s1 + $0x58] sm:$0xff]
        %v233 = vld [vmem:[%s1 + $0x60] sm:$0xff]
        %v234 = vld [vmem:[%s1 + $0x68] sm:$0xff]
        %v235 = vld [vmem:[%s1 + $0x70] sm:$0xff]
        %v236 = vld [vmem:[%s1 + $0x78] sm:$0xff]
        %v237 = vld [vmem:[%s2] sm:$0x3]
        %v239 = vlaneseq
        %v240 = vshrl.u32 %v239, 7
        %v241 = vsub.s32 0, %v240
        %v242 = vrot.slane %v237, %v241
        %v243 = vlaneseq
        %v244 = vshrl.u32 %v243, 7
        %v245 = vsub.s32 1, %v244
        %v246 = vrot.slane %v237, %v245
        %vm249 = vcmask 523264
        %v251 = vsel %vm249, %v220, 0
        %253 = vmatprep.subr.mxu0 0.0
        %254 = vmatpush1.msra.mxu0 0.0
        %255 = vmatprep.subr.mxu0 0.0
        %256 = vmatpush1.msra.mxu0 0.0
        %257 = vmatprep.subr.mxu0 0.0
        %258 = vmatpush1.msra.mxu0 0.0
        %259 = vmatprep.subr.mxu0 0.0
        %260 = vmatpush1.msra.mxu0 0.0
        %261 = vmatprep.subr.mxu0 0.0
        %262 = vmatpush1.msra.mxu0 0.0
        %263 = vmatprep.subr.mxu0 0.0
        %264 = vmatpush1.msra.mxu0 0.0
        %265 = vmatprep.subr.mxu0 0.0
        %266 = vmatpush1.msra.mxu0 0.0
        %267 = vmatprep.subr.mxu0 0.0
        %268 = vmatpush1.msra.mxu0 0.0
        %269 = vmatprep.subr.mxu0 %v236
        %270 = vmatpush1.msra.mxu0 %v235
        %271 = vmatprep.subr.mxu0 %v234
        %272 = vmatpush1.msra.mxu0 %v233
        %273 = vmatprep.subr.mxu0 %v232
        %274 = vmatpush1.msra.mxu0 %v231
        %275 = vmatprep.subr.mxu0 %v230
        %276 = vmatpush1.msra.mxu0 %v229
        %277 = vmatprep.subr.mxu0 %v228
        %278 = vmatpush1.msra.mxu0 %v227
        %279 = vmatprep.subr.mxu0 %v226
        %280 = vmatpush1.msra.mxu0 %v225
        %281 = vmatprep.subr.mxu0 %v224
        %282 = vmatpush1.msra.mxu0 %v223
        %283 = vmatprep.subr.mxu0 %v222
        %284 = vmatpush1.msra.mxu0 %v221
        %285 = vmatprep.subr.mxu0 0.0
        %286 = vmatpush2.msra.mxu0 0.0
        %287 = vmatprep.subr.mxu0 0.0
        %288 = vmatpush2.msra.mxu0 0.0
        %289 = vmatprep.subr.mxu0 0.0
        %290 = vmatpush2.msra.mxu0 0.0
        %291 = vmatprep.subr.mxu0 0.0
        %292 = vmatpush2.msra.mxu0 0.0
        %293 = vmatprep.subr.mxu0 0.0
        %294 = vmatpush2.msra.mxu0 0.0
        %295 = vmatprep.subr.mxu0 0.0
        %296 = vmatpush2.msra.mxu0 0.0
        %297 = vmatprep.subr.mxu0 0.0
        %298 = vmatpush2.msra.mxu0 0.0
        %299 = vmatprep.subr.mxu0 0.0
        %300 = vmatpush2.msra.mxu0 0.0
        %301 = vmatprep.subr.mxu0 0.0
        %302 = vmatpush2.msra.mxu0 0.0
        %303 = vmatprep.subr.mxu0 0.0
        %304 = vmatpush2.msra.mxu0 0.0
        %305 = vmatprep.subr.mxu0 0.0
        %306 = vmatpush2.msra.mxu0 0.0
        %307 = vmatprep.subr.mxu0 0.0
        %308 = vmatpush2.msra.mxu0 0.0
        %309 = vmatprep.subr.mxu0 0.0
        %310 = vmatpush2.msra.mxu0 0.0
        %311 = vmatprep.subr.mxu0 0.0
        %312 = vmatpush2.msra.mxu0 0.0
        %313 = vmatprep.subr.mxu0 0.0
        %314 = vmatpush2.msra.mxu0 0.0
        %315 = vmatprep.subr.mxu0 0.0
        %316 = vmatpush2.msra.mxu0 0.0
        %317 = vmatprep.mubr.f32.mxu0 0.0
        %318 = vmatmul.mubr.f32.gmra.mxu0 %v251
        %v319 = vpop.f32.mrf.mxu0
        %v320 = vadd.f32 %v242, %v319
        %v321 = vpop.f32.mrf.mxu0
        %v322 = vadd.f32 %v246, %v321
        %323 = vdwg.mxu0
        %v324 = vmax.f32 %v320, 0.0
        %v325 = vmax.f32 %v322, 0.0
        %v326 = vld [vmem:[%s3] sm:$0xff]
        %v327 = vld [vmem:[%s3 + $0x8] sm:$0xff]
        %v328 = vld [vmem:[%s3 + $0x10] sm:$0xff]
        %v329 = vld [vmem:[%s3 + $0x18] sm:$0xff]
        %v330 = vld [vmem:[%s3 + $0x20] sm:$0xff]
        %v331 = vld [vmem:[%s3 + $0x28] sm:$0xff]
        %v332 = vld [vmem:[%s3 + $0x30] sm:$0xff]
        %v333 = vld [vmem:[%s3 + $0x38] sm:$0xff]
        %v334 = vld [vmem:[%s3 + $0x40] sm:$0xff]
        %v335 = vld [vmem:[%s3 + $0x48] sm:$0xff]
        %v336 = vld [vmem:[%s3 + $0x50] sm:$0xff]
        %v337 = vld [vmem:[%s3 + $0x58] sm:$0xff]
        %v338 = vld [vmem:[%s3 + $0x60] sm:$0xff]
        %v339 = vld [vmem:[%s3 + $0x68] sm:$0xff]
        %v340 = vld [vmem:[%s3 + $0x70] sm:$0xff]
        %v341 = vld [vmem:[%s3 + $0x78] sm:$0xff]
        %v342 = vld [vmem:[%s3 + $0x80] sm:$0xff]
        %v343 = vld [vmem:[%s3 + $0x88] sm:$0xff]
        %v344 = vld [vmem:[%s3 + $0x90] sm:$0xff]
        %v345 = vld [vmem:[%s3 + $0x98] sm:$0xff]
        %v346 = vld [vmem:[%s3 + $0xa0] sm:$0xff]
        %v347 = vld [vmem:[%s3 + $0xa8] sm:$0xff]
        %v348 = vld [vmem:[%s3 + $0xb0] sm:$0xff]
        %v349 = vld [vmem:[%s3 + $0xb8] sm:$0xff]
        %v350 = vld [vmem:[%s3 + $0xc0] sm:$0xff]
        %v351 = vld [vmem:[%s3 + $0xc8] sm:$0xff]
        %v352 = vld [vmem:[%s3 + $0xd0] sm:$0xff]
        %v353 = vld [vmem:[%s3 + $0xd8] sm:$0xff]
        %v354 = vld [vmem:[%s3 + $0xe0] sm:$0xff]
        %v355 = vld [vmem:[%s3 + $0xe8] sm:$0xff]
        %v356 = vld [vmem:[%s3 + $0xf0] sm:$0xff]
        %v357 = vld [vmem:[%s3 + $0xf8] sm:$0xff]
        %v358 = vld [vmem:[%s4] sm:$0x1]
        %v360 = vlaneseq
        %v361 = vshrl.u32 %v360, 7
        %v362 = vsub.s32 0, %v361
        %v363 = vrot.slane %v358, %v362
        %365 = vmatprep.subr.mxu0 0.0
        %366 = vmatpush1.msra.mxu0 %v341
        %367 = vmatprep.subr.mxu0 0.0
        %368 = vmatpush1.msra.mxu0 %v340
        %369 = vmatprep.subr.mxu0 0.0
        %370 = vmatpush1.msra.mxu0 %v339
        %371 = vmatprep.subr.mxu0 0.0
        %372 = vmatpush1.msra.mxu0 %v338
        %373 = vmatprep.subr.mxu0 0.0
        %374 = vmatpush1.msra.mxu0 %v337
        %375 = vmatprep.subr.mxu0 0.0
        %376 = vmatpush1.msra.mxu0 %v336
        %377 = vmatprep.subr.mxu0 0.0
        %378 = vmatpush1.msra.mxu0 %v335
        %379 = vmatprep.subr.mxu0 0.0
        %380 = vmatpush1.msra.mxu0 %v334
        %381 = vmatprep.subr.mxu0 0.0
        %382 = vmatpush1.msra.mxu0 %v333
        %383 = vmatprep.subr.mxu0 0.0
        %384 = vmatpush1.msra.mxu0 %v332
        %385 = vmatprep.subr.mxu0 0.0
        %386 = vmatpush1.msra.mxu0 %v331
        %387 = vmatprep.subr.mxu0 0.0
        %388 = vmatpush1.msra.mxu0 %v330
        %389 = vmatprep.subr.mxu0 0.0
        %390 = vmatpush1.msra.mxu0 %v329
        %391 = vmatprep.subr.mxu0 0.0
        %392 = vmatpush1.msra.mxu0 %v328
        %393 = vmatprep.subr.mxu0 0.0
        %394 = vmatpush1.msra.mxu0 %v327
        %395 = vmatprep.subr.mxu0 0.0
        %396 = vmatpush1.msra.mxu0 %v326
        %397 = vmatprep.subr.mxu0 0.0
        %398 = vmatpush2.msra.mxu0 %v357
        %399 = vmatprep.subr.mxu0 0.0
        %400 = vmatpush2.msra.mxu0 %v356
        %401 = vmatprep.subr.mxu0 0.0
        %402 = vmatpush2.msra.mxu0 %v355
        %403 = vmatprep.subr.mxu0 0.0
        %404 = vmatpush2.msra.mxu0 %v354
        %405 = vmatprep.subr.mxu0 0.0
        %406 = vmatpush2.msra.mxu0 %v353
        %407 = vmatprep.subr.mxu0 0.0
        %408 = vmatpush2.msra.mxu0 %v352
        %409 = vmatprep.subr.mxu0 0.0
        %410 = vmatpush2.msra.mxu0 %v351
        %411 = vmatprep.subr.mxu0 0.0
        %412 = vmatpush2.msra.mxu0 %v350
        %413 = vmatprep.subr.mxu0 0.0
        %414 = vmatpush2.msra.mxu0 %v349
        %415 = vmatprep.subr.mxu0 0.0
        %416 = vmatpush2.msra.mxu0 %v348
        %417 = vmatprep.subr.mxu0 0.0
        %418 = vmatpush2.msra.mxu0 %v347
        %419 = vmatprep.subr.mxu0 0.0
        %420 = vmatpush2.msra.mxu0 %v346
        %421 = vmatprep.subr.mxu0 0.0
        %422 = vmatpush2.msra.mxu0 %v345
        %423 = vmatprep.subr.mxu0 0.0
        %424 = vmatpush2.msra.mxu0 %v344
        %425 = vmatprep.subr.mxu0 0.0
        %426 = vmatpush2.msra.mxu0 %v343
        %427 = vmatprep.subr.mxu0 0.0
        %428 = vmatpush2.msra.mxu0 %v342
        %429 = vmatprep.mubr.f32.mxu0 %v325
        %430 = vmatmul.mubr.f32.gmra.mxu0 %v324
        %v431 = vpop.f32.mrf.mxu0
        %v432 = vadd.f32 %v363, %v431
        %v433 = vpop.f32.mrf.mxu0
        %434 = vdwg.mxu0
        %435 = vst.msk [vmem:[%s215] sm:$0xff] %vm249, %v432
        %s436 = sand.u32 %s137, 1
        %s437 = scalar_lea.sflag [#allocation3], %s436
        %s438 = sand.u32 %s137, 1
        %s439 = smul.addr %s438, 8
        %s440 = scalar_lea.vmem [#allocation2], %s439
        // Predicated region
        $region41: #{tpu_custom_call.1} parent=39 // pred_check
          %p441 = pneg %p147
        $region42: #{tpu_custom_call.1} parent=39 // pred_check_branch
          %443 = sbr.rel (%p441) target = $region44
        $region43: #{tpu_custom_call.1} parent=39 // pred_region
          %s445 = ssub.s32 128, 128
          %446 = vsyncadd %s437, %s445
          %s447 = smul.addr %s19, 128
          %s448 = scalar_lea.hbm %s5, %s447
          %s450 = sshll.u32 %s440, 4
          %s451 = int_to_ptr.vmem [resolvable:$true] %s450
          %453 = dma.vmem_to_hbm [thread:$0]  %s451, 128, %s448, %s437
        $region44: #{tpu_custom_call.1} parent=39 // pred_fallthru
          _
      $region40: #{tpu_custom_call.1} parent=5 // pred_fallthru
        _
      %p454 = scmp.le.s32.totalorder 2, %s14
      // Predicated region
      $region45: #{tpu_custom_call.1} parent=5 // pred_check
        %p455 = pneg %p454
      $region46: #{tpu_custom_call.1} parent=5 // pred_check_branch
        %457 = sbr.rel (%p455) target = $region48
      $region47: #{tpu_custom_call.1} parent=5 // pred_region
        %s458 = ssub.s32 %s14, 2
        // Predicated region
        $region49: #{tpu_custom_call.1} parent=47 // pred_check
          %p459 = pneg %p153
        $region50: #{tpu_custom_call.1} parent=47 // pred_check_branch
          %461 = sbr.rel (%p459) target = $region52
        $region51: #{tpu_custom_call.1} parent=47 // pred_region
          %s462 = sand.u32 %s138, 1
          %s463 = scalar_lea.sflag [#allocation3], %s462
          %s464 = sand.u32 %s138, 1
          %s465 = smul.addr %s464, 8
          %s466 = scalar_lea.vmem [#allocation2], %s465
          %467 = dma.done %s463, 128
        $region52: #{tpu_custom_call.1} parent=47 // pred_fallthru
          _
      $region48: #{tpu_custom_call.1} parent=5 // pred_fallthru
        _
    $region6: #{tpu_custom_call.1} parent=1 // loop_footer
      %s18 = sadd.s32 1, %s14
    $region7: #{tpu_custom_call.1} parent=1 // loop_footer_branch
      %13 = sbr.rel target = $region3
    $region8: #{tpu_custom_call.1} parent=1 // loop_exit
      _
    %468 = vsyncpa [#allocation3], 1
    %s469 = scalar_lea.sflag [#allocation3], 1
    %470 = vsyncpa %s469, 1

</llo_original>
